<compile_context>
chip_gen: v7x
topology: tpu7x:2x2x1
jax: 0.10.0
libtpu: 0.0.40
codegen_flags: <defaults>
</compile_context>

<pallas_src>
import math

import jax
import jax.numpy as jnp
from jax.experimental import pallas as pl
from jax.experimental.pallas import tpu as pltpu


def attention_kernel(x_ref, w_ref, b_ref, o_ref):
    x = x_ref[...]                                   # (TB, S, F) f32
    w = w_ref[...]                                   # (1, 1, F)  f32 (resident)
    b = b_ref[...]                                   # (1, S, 1)  f32 (resident)

    # eij = x @ weight, but computed as a VPU multiply + lane reduce so the
    # 1-wide result never touches the MXU.  Kept in (TB, S, 1) layout.
    s = jnp.sum(x * w, axis=-1, keepdims=True)       # (TB, S, 1)
    eij = jnp.tanh(s + b)                            # (TB, S, 1), bias broadcast over batch
    a = jnp.exp(eij)                                 # (TB, S, 1)

    # Row-normalize over the sequence axis.  Exact f32 divide — matches torch
    # `a / torch.sum(a, 1, keepdim=True) + 1e-10`.  (Approximate reciprocal was
    # not accurate enough and is unnecessary at this op count.)
    denom = jnp.sum(a, axis=1, keepdims=True)        # (TB, 1, 1)
    a = a / denom + 1e-10                            # (TB, S, 1)

    # weighted_input = x * a (lane-broadcast of a along F), reduce over S.
    o_ref[...] = jnp.sum(x * a, axis=1)              # (TB, F)


def _pick_batch_tile(batch, step_dim, feature_dim, dtype_bytes=4,
                     budget_bytes=8 * 1024 * 1024):
    """Largest batch tile whose double-buffered x block stays within ~budget.

    8 MiB per buffer (16 MiB double-buffered) is comfortably inside the default
    scoped-VMEM limits of v5e (16 MiB), v6e (32 MiB) and v7x (32 MiB of 64 MiB).
    """
    per_row = step_dim * feature_dim * dtype_bytes
    tb = max(1, budget_bytes // (2 * per_row))
    return int(min(batch, tb))


def attention_forward(x, weight, bias):
    """x: (B, S, F) f32; weight: (F, 1) f32; bias: (S,) f32 -> (B, F) f32."""
    B, S, F = x.shape
    w3 = weight.reshape(1, 1, F)          # lane-major weight for VPU broadcast
    b3 = bias.reshape(1, S, 1)            # matches (TB, S, 1) score layout

    TB = _pick_batch_tile(B, S, F)
    grid = (pl.cdiv(B, TB),)

    return pl.pallas_call(
        attention_kernel,
        out_shape=jax.ShapeDtypeStruct((B, F), x.dtype),
        grid=grid,
        in_specs=[
            pl.BlockSpec((TB, S, F), lambda i: (i, 0, 0)),   # streamed per batch tile
            pl.BlockSpec((1, 1, F), lambda i: (0, 0, 0)),    # resident weight
            pl.BlockSpec((1, S, 1), lambda i: (0, 0, 0)),    # resident bias
        ],
        out_specs=pl.BlockSpec((TB, F), lambda i: (i, 0)),
        compiler_params=pltpu.CompilerParams(
            dimension_semantics=("parallel",)),
    )(x, w3, b3)


def attention_reference(x, weight, bias):
    B, S, F = x.shape
    eij = (x.reshape(-1, F) @ weight).reshape(B, S) + bias
    eij = jnp.tanh(eij)
    a = jnp.exp(eij)
    a = a / jnp.sum(a, axis=1, keepdims=True) + 1e-10
    return jnp.sum(x * a[:, :, None], axis=1)


if __name__ == "__main__":
    # Module hyperparameters (small, consistent with the forward pass).
    batch = 2
    step_dim = 8       # max sequence length
    feature_dim = 32   # input feature size

    key = jax.random.PRNGKey(0)
    kx, kw = jax.random.split(key)

    # Deterministic parameter init mirroring the PyTorch __init__:
    #   weight: xavier_uniform_ on shape (feature_dim, 1)
    #   bias  : zeros of shape (step_dim,)
    bound = math.sqrt(6.0 / (feature_dim + 1))
    weight = jax.random.uniform(kw, (feature_dim, 1), jnp.float32,
                                minval=-bound, maxval=bound)
    bias = jnp.zeros((step_dim,), jnp.float32)

    # Example input: (batch, step_dim, feature_dim)
    x = jax.random.normal(kx, (batch, step_dim, feature_dim), jnp.float32)

    # TODO(synk): optional `mask` argument of the PyTorch forward is not
    # implemented (forward is exercised with mask=None).

    out = attention_forward(x, weight, bias)
    out = jax.block_until_ready(out)

    ref = attention_reference(x, weight, bias)
    assert out.shape == (batch, feature_dim)
    # Exact f32 arithmetic in the kernel; only sum-ordering differences remain.
    assert jnp.allclose(out, ref, atol=1e-4, rtol=1e-4)

    print("KERNEL_OK")
</pallas_src>

<mosaic_0001>
module attributes {stable_mosaic.version = 11 : i64} {
  func.func @attention_kernel(%arg0: i32, %arg1: memref<2x8x32xf32, #tpu.memory_space<vmem>>, %arg2: memref<1x1x32xf32, #tpu.memory_space<vmem>>, %arg3: memref<1x8x1xf32, #tpu.memory_space<vmem>>, %arg4: memref<2x32xf32, #tpu.memory_space<vmem>>) attributes {dimension_semantics = [#tpu.dimension_semantics<parallel>], iteration_bounds = array<i64: 1>, scalar_prefetch = 0 : i64, scratch_operands = 0 : i64, tpu.core_type = #tpu.core_type<tc>, window_params = [{transform_indices = @transform_0, window_bounds = array<i64: 2, 8, 32>}, {pipeline_mode = #tpu.pipeline_mode<synchronous>, transform_indices = @transform_1, window_bounds = array<i64: 1, 1, 32>}, {pipeline_mode = #tpu.pipeline_mode<synchronous>, transform_indices = @transform_2, window_bounds = array<i64: 1, 8, 1>}, {transform_indices = @transform_3, window_bounds = array<i64: 2, 32>}]} {
    %c0 = arith.constant 0 : index
    %c0_0 = arith.constant 0 : index
    %c0_1 = arith.constant 0 : index
    %0 = vector.load %arg1[%c0, %c0_0, %c0_1] : memref<2x8x32xf32, #tpu.memory_space<vmem>>, vector<2x8x32xf32>
    %c0_2 = arith.constant 0 : index
    %c0_3 = arith.constant 0 : index
    %c0_4 = arith.constant 0 : index
    %1 = vector.load %arg2[%c0_2, %c0_3, %c0_4] : memref<1x1x32xf32, #tpu.memory_space<vmem>>, vector<1x1x32xf32>
    %c0_5 = arith.constant 0 : index
    %c0_6 = arith.constant 0 : index
    %c0_7 = arith.constant 0 : index
    %2 = vector.load %arg3[%c0_5, %c0_6, %c0_7] : memref<1x8x1xf32, #tpu.memory_space<vmem>>, vector<1x8x1xf32>
    %3 = vector.broadcast %1 : vector<1x1x32xf32> to vector<2x8x32xf32>
    %4 = arith.mulf %0, %3 : vector<2x8x32xf32>
    %cst = arith.constant dense<0.000000e+00> : vector<2x8xf32>
    %5 = vector.multi_reduction <add>, %4, %cst [2] : vector<2x8x32xf32> to vector<2x8xf32>
    %6 = vector.shape_cast %5 : vector<2x8xf32> to vector<2x8x1xf32>
    %7 = vector.broadcast %2 : vector<1x8x1xf32> to vector<2x8x1xf32>
    %8 = arith.addf %6, %7 : vector<2x8x1xf32>
    %9 = math.tanh %8 : vector<2x8x1xf32>
    %10 = math.exp %9 : vector<2x8x1xf32>
    %cst_8 = arith.constant dense<0.000000e+00> : vector<2x1xf32>
    %11 = vector.multi_reduction <add>, %10, %cst_8 [1] : vector<2x8x1xf32> to vector<2x1xf32>
    %12 = vector.shape_cast %11 : vector<2x1xf32> to vector<2x1x1xf32>
    %13 = vector.broadcast %12 : vector<2x1x1xf32> to vector<2x8x1xf32>
    %14 = arith.divf %10, %13 : vector<2x8x1xf32>
    %cst_9 = arith.constant 1.000000e-10 : f32
    %15 = vector.broadcast %cst_9 : f32 to vector<2x8x1xf32>
    %16 = arith.addf %14, %15 : vector<2x8x1xf32>
    %17 = vector.broadcast %16 : vector<2x8x1xf32> to vector<2x8x32xf32>
    %18 = arith.mulf %0, %17 : vector<2x8x32xf32>
    %cst_10 = arith.constant dense<0.000000e+00> : vector<2x32xf32>
    %19 = vector.multi_reduction <add>, %18, %cst_10 [1] : vector<2x8x32xf32> to vector<2x32xf32>
    %c0_11 = arith.constant 0 : index
    %c0_12 = arith.constant 0 : index
    %20 = vector.load %arg4[%c0_11, %c0_12] : memref<2x32xf32, #tpu.memory_space<vmem>>, vector<2x32xf32>
    tpu.vector_store %arg4[%c0_11, %c0_12], %19 {strides = array<i32>} : memref<2x32xf32, #tpu.memory_space<vmem>>, vector<2x32xf32>,
    return
  }
  func.func @transform_0(%arg0: i32) -> (i32, i32, i32) {
    %c0_i32 = arith.constant 0 : i32
    %c0_i32_0 = arith.constant 0 : i32
    %c0_i32_1 = arith.constant 0 : i32
    return %arg0, %c0_i32, %c0_i32_0 : i32, i32, i32
  }
  func.func @transform_1(%arg0: i32) -> (i32, i32, i32) {
    %c0_i32 = arith.constant 0 : i32
    %c0_i32_0 = arith.constant 0 : i32
    %c0_i32_1 = arith.constant 0 : i32
    %c0_i32_2 = arith.constant 0 : i32
    return %c0_i32, %c0_i32_0, %c0_i32_1 : i32, i32, i32
  }
  func.func @transform_2(%arg0: i32) -> (i32, i32, i32) {
    %c0_i32 = arith.constant 0 : i32
    %c0_i32_0 = arith.constant 0 : i32
    %c0_i32_1 = arith.constant 0 : i32
    %c0_i32_2 = arith.constant 0 : i32
    return %c0_i32, %c0_i32_0, %c0_i32_1 : i32, i32, i32
  }
  func.func @transform_3(%arg0: i32) -> (i32, i32) {
    %c0_i32 = arith.constant 0 : i32
    %c0_i32_0 = arith.constant 0 : i32
    return %arg0, %c0_i32 : i32, i32
  }
}

</mosaic_0001>

<llo_original>
// kernel: tpu_custom_call.1
$region0: #{tpu_custom_call.1}
  #allocation0 [shape = 'u32[]', space=smem, size = 0x4, offset = 0x4, fixed_abs, tag = 'smem constant byte address 0x4 - core index']
  #allocation1 [shape = 'u32[144,128]{1,0:T(1,128)}', space=vmem, size = 0x12000, scoped, tag = 'internal scratch']
  %s0 = inlined_call_operand.hbm [shape: f32[2,8,32], index: 0, kind: input, shape index: {}]
  %s1 = inlined_call_operand.vmem [shape: f32[1,1,32], index: 1, kind: input, shape index: {}]
  %s2 = inlined_call_operand.vmem [shape: f32[1,8,1], index: 2, kind: input, shape index: {}]
  %s3 = inlined_call_operand.hbm [shape: f32[2,32], index: 3, kind: output, shape index: {}]
  %s4 = sld [smem:[#allocation0]]
  $region26: #{tpu_custom_call.1} parent=0
    _
  %s6 = ssub.s32 1, %s4
  %s7 = scalar_select 0, %s6, %s4
  $region1: #{tpu_custom_call.1} parent=0
    #allocation2 [shape = 'u8[8192]{0}', space=vmem, size = 0x2000, scoped, tag = 'input window, operand 0, single buffered']
    #allocation3 [shape = 's32[1]{0}', space=sflag, size = 0x4, scoped, tag = 'scoped memory for tpu_custom_call.1']
    #allocation4 [shape = 's32[1]{0}', space=sflag, size = 0x4, scoped, tag = 'scoped memory for tpu_custom_call.1']
    #allocation5 [shape = 'u8[1024]{0}', space=vmem, size = 0x400, scoped, tag = 'output window, operand 0, single buffered']
    %8 = vsyncpa [#allocation3], 0
    %9 = vsyncpa [#allocation4], 0
    // Predicated region
    $region2: #{tpu_custom_call.1} parent=1 // pred_check
      _
    $region3: #{tpu_custom_call.1} parent=1 // pred_check_branch
      %11 = sbr.rel (0) target = $region5
    $region4: #{tpu_custom_call.1} parent=1 // pred_region
      %s13 = ssub.s32 256, 256
      %14 = vsyncadd [#allocation3], %s13
      %s15 = sshll.u32 [#allocation2], 4
      %s16 = int_to_ptr.vmem [resolvable:$true] %s15
      %21 = dma.hbm_to_vmem [thread:$0]  %s0, 256, %s16, [#allocation3], 128, 128, 8
    $region5: #{tpu_custom_call.1} parent=1 // pred_fallthru
      _
    // Predicated region
    $region6: #{tpu_custom_call.1} parent=1 // pred_check
      _
    $region7: #{tpu_custom_call.1} parent=1 // pred_check_branch
      %23 = sbr.rel (0) target = $region9
    $region8: #{tpu_custom_call.1} parent=1 // pred_region
      _
    $region9: #{tpu_custom_call.1} parent=1 // pred_fallthru
      _
    // Predicated region
    $region10: #{tpu_custom_call.1} parent=1 // pred_check
      _
    $region11: #{tpu_custom_call.1} parent=1 // pred_check_branch
      %25 = sbr.rel (0) target = $region13
    $region12: #{tpu_custom_call.1} parent=1 // pred_region
      _
    $region13: #{tpu_custom_call.1} parent=1 // pred_fallthru
      _
    // Predicated region
    $region14: #{tpu_custom_call.1} parent=1 // pred_check
      _
    $region15: #{tpu_custom_call.1} parent=1 // pred_check_branch
      %27 = sbr.rel (0) target = $region17
    $region16: #{tpu_custom_call.1} parent=1 // pred_region
      %28 = dma.done [#allocation3], 256
    $region17: #{tpu_custom_call.1} parent=1 // pred_fallthru
      _
    %v29 = vld [vmem:[#allocation2] sm:$0xff]
    %v30 = vld [vmem:[#allocation2 + $0x8] sm:$0xff]
    %v31 = vld [vmem:[%s1] sm:$0x1]
    %v32 = vld [vmem:[%s2] sm:$0xff]
    %v34 = vlaneseq
    %v35 = vshrl.u32 %v34, 7
    %v36 = vsub.s32 0, %v35
    %v37 = vrot.slane %v31, %v36
    %v39 = vmul.f32 %v29, %v37
    %v40 = vmul.f32 %v30, %v37
    %vm41 = vcmask 261120
    %v42 = vsel %vm41, %v39, 0.0
    %43 = vadd.xlane.f32.xlu0 %v42
    %v44 = vpop.xlane.xlu0 %43
    %v45 = vsel %vm41, %v40, 0.0
    %46 = vadd.xlane.f32.xlu0 %v45
    %v47 = vpop.xlane.xlu0 %46
    %v48 = vadd.f32 %v44, %v32
    %v49 = vadd.f32 %v47, %v32
    %v50 = vtanh.pop %v48
    %v51 = vtanh.pop %v49
    %v52 = vmul.f32 %v50, 1.442695
    %v53 = vpow.pop %v52
    %v54 = vmul.f32 %v51, 1.442695
    %v55 = vpow.pop %v54
    %vm56 = vcmask 7168
    %v57 = vsel %vm56, %v53, 0.0
    %v58 = vrot.slane %v57, 4
    %v59 = vadd.f32 %v57, %v58
    %v60 = vrot.slane %v59, 2
    %v61 = vadd.f32 %v59, %v60
    %v62 = vrot.slane %v61, 1
    %v63 = vadd.f32 %v61, %v62
    %v64 = vsel %vm56, %v55, 0.0
    %v65 = vrot.slane %v64, 4
    %v66 = vadd.f32 %v64, %v65
    %v67 = vrot.slane %v66, 2
    %v68 = vadd.f32 %v66, %v67
    %v69 = vrot.slane %v68, 1
    %v70 = vadd.f32 %v68, %v69
    %v71 = vrcp.pop %v63
    %v72 = vmul.f32 %v53, %v71
    %v73 = vrcp.pop %v70
    %v74 = vmul.f32 %v55, %v73
    %v75 = vadd.f32 %v72, 1e-10
    %v76 = vadd.f32 %v74, 1e-10
    %78 = vset.pattern.permute.xlu0 0
    %79 = vperm.xlu0 %78, %v75
    %v80 = vpop.permute.xlu0 %79
    %83 = vset.pattern.permute.xlu0 0
    %84 = vperm.xlu0 %83, %v76
    %v85 = vpop.permute.xlu0 %84
    %v87 = vmul.f32 %v29, %v80
    %v88 = vmul.f32 %v30, %v85
    %v89 = vsel %vm41, %v87, 0.0
    %v90 = vrot.slane %v89, 4
    %v91 = vadd.f32 %v89, %v90
    %v92 = vrot.slane %v91, 2
    %v93 = vadd.f32 %v91, %v92
    %v94 = vrot.slane %v93, 1
    %v95 = vadd.f32 %v93, %v94
    %v96 = vsel %vm41, %v88, 0.0
    %v97 = vrot.slane %v96, 4
    %v98 = vadd.f32 %v96, %v97
    %v99 = vrot.slane %v98, 2
    %v100 = vadd.f32 %v98, %v99
    %v101 = vrot.slane %v100, 1
    %v102 = vadd.f32 %v100, %v101
    %vm105 = vcmask 1041409
    %v106 = vsel %vm105, %v102, %v95
    %vm108 = vcmask 254976
    %109 = vst.msk [vmem:[#allocation5] sm:$0x3] %vm108, %v106
    // Predicated region
    $region18: #{tpu_custom_call.1} parent=1 // pred_check
      _
    $region19: #{tpu_custom_call.1} parent=1 // pred_check_branch
      %111 = sbr.rel (0) target = $region21
    $region20: #{tpu_custom_call.1} parent=1 // pred_region
      %s113 = ssub.s32 32, 32
      %114 = vsyncadd [#allocation4], %s113
      %s116 = sshll.u32 [#allocation5], 4
      %s117 = int_to_ptr.vmem [resolvable:$true] %s116
      %119 = dma.vmem_to_hbm [thread:$0]  %s117, 32, %s3, [#allocation4]
    $region21: #{tpu_custom_call.1} parent=1 // pred_fallthru
      _
    // Predicated region
    $region22: #{tpu_custom_call.1} parent=1 // pred_check
      _
    $region23: #{tpu_custom_call.1} parent=1 // pred_check_branch
      %121 = sbr.rel (0) target = $region25
    $region24: #{tpu_custom_call.1} parent=1 // pred_region
      %122 = dma.done [#allocation4], 32
    $region25: #{tpu_custom_call.1} parent=1 // pred_fallthru
      _
    %123 = vsyncpa [#allocation3], 1
    %124 = vsyncpa [#allocation4], 1

</llo_original>
